<compile_context>
chip_gen: v7x
topology: tpu7x:2x2x1
jax: 0.10.0
libtpu: 0.0.40
codegen_flags: <defaults>
</compile_context>

<pallas_src>
import jax
import jax.numpy as jnp
from jax.experimental import pallas as pl
from jax.experimental.pallas import tpu as pltpu

INPUT_DIM = 32 * 32 * 3              # matches self.input_dim in the PyTorch module
LANES = 128                          # vreg lane width
ROWS_PER_IMAGE = INPUT_DIM // LANES  # 24 (multiple of 8 -> sublane dense for f32)
MAX_ROW_TILE = 2048                  # 2048*128*4 B = 1 MiB per f32 buffer


def _encoder_identity_kernel(x_ref, o_ref):
    # One (row_tile, 128) sublane/lane-dense block resident in VMEM.
    # HBM-bandwidth-bound on every generation; no body-level micro-opt helps.
    o_ref[...] = x_ref[...]


def _sublane_granule(dtype) -> int:
    """Packed sublane granule: 8 rows for 4-byte, 16 for 2-byte, 32 for 1-byte."""
    return {4: 8, 2: 16, 1: 32}.get(jnp.dtype(dtype).itemsize, 8)


def _pick_row_tile(rows: int, dtype) -> int:
    """Largest useful row tile: full extent when it fits, else a divisor of
    `rows` that is a multiple of the sublane granule and <= MAX_ROW_TILE."""
    granule = _sublane_granule(dtype)
    if rows <= MAX_ROW_TILE:
        return rows                              # single full-extent block
    cap = (MAX_ROW_TILE // granule) * granule
    tile = None
    for cand in range(cap, granule - 1, -granule):
        if rows % cand == 0:                     # divides rows -> no masked tail
            tile = cand
            break
    if tile is None:
        return cap                               # fallback: masked tail (correct)
    # v7x nicety: if the step count is odd, halving the tile makes it even so
    # both TensorCores stay busy; only do it while the tile stays >= 256 KiB.
    if (rows // tile) % 2 and tile % (2 * granule) == 0 and tile // 2 >= 512:
        tile //= 2
    return tile


def encoder_forward(x_nchw, use_pallas: bool = True):
    """Encoder.forward equivalent: flatten NCHW image to (B, input_dim)."""
    b, c, h, w = x_nchw.shape
    assert c * h * w == INPUT_DIM, "input must match Encoder.input_dim (3072)"

    if not use_pallas:
        # Zero-cost path recommended by the perf review: reshape is a free view.
        return x_nchw.reshape(b, INPUT_DIM)

    # Row-major reshape == torch.flatten(x, 1) element order.  Present the
    # flat data as (B*24, 128): sublane-dense and lane-dense (last dim = 128).
    rows = b * ROWS_PER_IMAGE
    x_rows = x_nchw.reshape(rows, LANES)
    itemsize = jnp.dtype(x_rows.dtype).itemsize

    row_tile = _pick_row_tile(rows, x_rows.dtype)
    grid = (pl.cdiv(rows, row_tile),)

    out_rows = pl.pallas_call(
        _encoder_identity_kernel,
        out_shape=jax.ShapeDtypeStruct((rows, LANES), x_rows.dtype),
        grid_spec=pltpu.PrefetchScalarGridSpec(
            num_scalar_prefetch=0,
            grid=grid,
            in_specs=[pl.BlockSpec((row_tile, LANES), lambda i: (i, 0))],
            out_specs=pl.BlockSpec((row_tile, LANES), lambda i: (i, 0)),
        ),
        # Identity: output reuses the input HBM buffer (copy-free when donated).
        input_output_aliases={0: 0},
        # Pure bandwidth op: 0 flops, read + write of the whole array.
        cost_estimate=pl.CostEstimate(
            flops=0,
            transcendentals=0,
            bytes_accessed=2 * rows * LANES * itemsize,
        ),
        compiler_params=pltpu.CompilerParams(
            # Independent row tiles: shard across both TCs on v7x (trims
            # per-TC step overhead only; HBM pipe is shared); no-op on
            # single-TC v5e/v6e.
            dimension_semantics=("parallel",),
        ),
    )(x_rows)

    # View back to the (B, input_dim) flatten the module implies.
    return out_rows.reshape(b, INPUT_DIM)


if __name__ == "__main__":
    key = jax.random.PRNGKey(0)
    # Small batch; image size implied by input_dim = 32*32*3.
    x = jax.random.normal(key, (2, 3, 32, 32), dtype=jnp.float32)

    # Pure-JAX reference (row-major flatten), computed before the kernel runs.
    ref = x.reshape(2, INPUT_DIM)

    y = encoder_forward(x)
    jax.block_until_ready(y)

    assert y.shape == (2, INPUT_DIM)
    assert jnp.array_equal(y, ref)

    print("KERNEL_OK")
</pallas_src>

<mosaic_0001>
module attributes {stable_mosaic.version = 11 : i64} {
  func.func @_encoder_identity_kernel(%arg0: i32, %arg1: memref<48x128xf32, #tpu.memory_space<vmem>>, %arg2: memref<48x128xf32, #tpu.memory_space<vmem>>) attributes {dimension_semantics = [#tpu.dimension_semantics<parallel>], iteration_bounds = array<i64: 1>, scalar_prefetch = 0 : i64, scratch_operands = 0 : i64, tpu.core_type = #tpu.core_type<tc>, window_params = [{transform_indices = @transform_0, window_bounds = array<i64: 48, 128>}, {transform_indices = @transform_1, window_bounds = array<i64: 48, 128>}]} {
    %c0 = arith.constant 0 : index
    %c0_0 = arith.constant 0 : index
    %0 = vector.load %arg1[%c0, %c0_0] : memref<48x128xf32, #tpu.memory_space<vmem>>, vector<48x128xf32>
    %c0_1 = arith.constant 0 : index
    %c0_2 = arith.constant 0 : index
    %1 = vector.load %arg2[%c0_1, %c0_2] : memref<48x128xf32, #tpu.memory_space<vmem>>, vector<48x128xf32>
    tpu.vector_store %arg2[%c0_1, %c0_2], %0 {strides = array<i32>} : memref<48x128xf32, #tpu.memory_space<vmem>>, vector<48x128xf32>,
    return
  }
  func.func @transform_0(%arg0: i32) -> (i32, i32) {
    %c0_i32 = arith.constant 0 : i32
    %c0_i32_0 = arith.constant 0 : i32
    return %arg0, %c0_i32 : i32, i32
  }
  func.func @transform_1(%arg0: i32) -> (i32, i32) {
    %c0_i32 = arith.constant 0 : i32
    %c0_i32_0 = arith.constant 0 : i32
    return %arg0, %c0_i32 : i32, i32
  }
}

</mosaic_0001>

<llo_original>
// kernel: tpu_custom_call.1
$region0: #{tpu_custom_call.1}
  #allocation0 [shape = 'u32[]', space=smem, size = 0x4, offset = 0x4, fixed_abs, tag = 'smem constant byte address 0x4 - core index']
  #allocation1 [shape = 'u32[144,128]{1,0:T(1,128)}', space=vmem, size = 0x12000, scoped, tag = 'internal scratch']
  %s0 = inlined_call_operand.hbm [shape: f32[48,128], index: 0, kind: input, shape index: {}, may-alias: {0,1}]
  %s1 = inlined_call_operand.hbm [shape: f32[48,128], index: 1, kind: output, shape index: {}, may-alias: {0,1}]
  %s2 = sld [smem:[#allocation0]]
  $region18: #{tpu_custom_call.1} parent=0
    _
  %s4 = ssub.s32 1, %s2
  %s5 = scalar_select 0, %s4, %s2
  $region1: #{tpu_custom_call.1} parent=0
    #allocation2 [shape = 'u8[24576]{0}', space=vmem, size = 0x6000, scoped, tag = 'input window, operand 0, single buffered']
    #allocation3 [shape = 's32[1]{0}', space=sflag, size = 0x4, scoped, tag = 'scoped memory for tpu_custom_call.1']
    #allocation4 [shape = 's32[1]{0}', space=sflag, size = 0x4, scoped, tag = 'scoped memory for tpu_custom_call.1']
    #allocation5 [shape = 'u8[24576]{0}', space=vmem, size = 0x6000, scoped, tag = 'output window, operand 0, single buffered']
    %6 = vsyncpa [#allocation3], 0
    %7 = vsyncpa [#allocation4], 0
    // Predicated region
    $region2: #{tpu_custom_call.1} parent=1 // pred_check
      _
    $region3: #{tpu_custom_call.1} parent=1 // pred_check_branch
      %9 = sbr.rel (0) target = $region5
    $region4: #{tpu_custom_call.1} parent=1 // pred_region
      %s11 = ssub.s32 768, 768
      %12 = vsyncadd [#allocation3], %s11
      %s13 = sshll.u32 [#allocation2], 4
      %s14 = int_to_ptr.vmem [resolvable:$true] %s13
      %19 = dma.hbm_to_vmem [thread:$0]  %s0, 768, %s14, [#allocation3], 128, 128, 8
    $region5: #{tpu_custom_call.1} parent=1 // pred_fallthru
      _
    // Predicated region
    $region6: #{tpu_custom_call.1} parent=1 // pred_check
      _
    $region7: #{tpu_custom_call.1} parent=1 // pred_check_branch
      %21 = sbr.rel (0) target = $region9
    $region8: #{tpu_custom_call.1} parent=1 // pred_region
      %22 = dma.done [#allocation3], 768
    $region9: #{tpu_custom_call.1} parent=1 // pred_fallthru
      _
    %v23 = vld [vmem:[#allocation2] sm:$0xff]
    %v24 = vld [vmem:[#allocation2 + $0x8] sm:$0xff]
    %v25 = vld [vmem:[#allocation2 + $0x10] sm:$0xff]
    %v26 = vld [vmem:[#allocation2 + $0x18] sm:$0xff]
    %v27 = vld [vmem:[#allocation2 + $0x20] sm:$0xff]
    %v28 = vld [vmem:[#allocation2 + $0x28] sm:$0xff]
    %29 = vst [vmem:[#allocation5] sm:$0xff] %v23
    %30 = vst [vmem:[#allocation5 + $0x8] sm:$0xff] %v24
    %31 = vst [vmem:[#allocation5 + $0x10] sm:$0xff] %v25
    %32 = vst [vmem:[#allocation5 + $0x18] sm:$0xff] %v26
    %33 = vst [vmem:[#allocation5 + $0x20] sm:$0xff] %v27
    %34 = vst [vmem:[#allocation5 + $0x28] sm:$0xff] %v28
    // Predicated region
    $region10: #{tpu_custom_call.1} parent=1 // pred_check
      _
    $region11: #{tpu_custom_call.1} parent=1 // pred_check_branch
      %36 = sbr.rel (0) target = $region13
    $region12: #{tpu_custom_call.1} parent=1 // pred_region
      %s38 = ssub.s32 768, 768
      %39 = vsyncadd [#allocation4], %s38
      %s40 = sshll.u32 [#allocation5], 4
      %s41 = int_to_ptr.vmem [resolvable:$true] %s40
      %46 = dma.vmem_to_hbm [thread:$0]  %s41, 768, %s1, [#allocation4], 128, 128, 8
    $region13: #{tpu_custom_call.1} parent=1 // pred_fallthru
      _
    // Predicated region
    $region14: #{tpu_custom_call.1} parent=1 // pred_check
      _
    $region15: #{tpu_custom_call.1} parent=1 // pred_check_branch
      %48 = sbr.rel (0) target = $region17
    $region16: #{tpu_custom_call.1} parent=1 // pred_region
      %49 = dma.done [#allocation4], 768
    $region17: #{tpu_custom_call.1} parent=1 // pred_fallthru
      _
    %50 = vsyncpa [#allocation3], 1
    %51 = vsyncpa [#allocation4], 1

</llo_original>
